<compile_context>
chip_gen: v5e
topology: v5e:2x2
jax: 0.10.0
libtpu: 0.0.40
codegen_flags: <defaults>
</compile_context>

<pallas_src>
import jax
import jax.numpy as jnp
from jax.experimental import pallas as pl
from jax.experimental.pallas import tpu as pltpu

LANE = 128      # vreg lane width (hidden dim padded to this for lane density)
SUBLANE = 8     # f32 sublane granularity for the batch (row) dimension


def _round_up(n, m):
    return (n + m - 1) // m * m


def mlp_kernel(x_ref, w1_ref, b1_ref, w2_ref, b2_ref, o_ref):
    # Cast the streamed f32 x tile to bf16 in-kernel (VPU); no HBM copy.
    x = x_ref[...].astype(jnp.bfloat16)
    # fc1: [tb, I] @ [I, H_p] on the MXU, bf16 operands, f32 accumulation.
    h = jnp.dot(x, w1_ref[...], preferred_element_type=jnp.float32)
    # Bias add + ReLU in f32.
    h = jnp.maximum(h + b1_ref[...], 0.0)
    # fc2: [tb, H_p] @ [H_p, O]; bf16 recipe (f32 accumulation) — accepted.
    out = jnp.dot(h.astype(jnp.bfloat16), w2_ref[...],
                  preferred_element_type=jnp.float32)
    o_ref[...] = (out + b2_ref[...]).astype(o_ref.dtype)


def flashcard_rl_forward(x, w1, b1, w2, b2, *, tile_b=1024):
    """Fused MLP forward.

    x:  [B, I]  float32
    w1: [I, H], b1: [1, H], w2: [H, O], b2: [1, O]   (W stored [in, out])
    returns [B, O] float32
    """
    B, I = x.shape
    H = w1.shape[1]
    O = w2.shape[1]

    # Hidden dim padded to the lane width (zeros => exact); I and O stay logical.
    H_p = _round_up(H, LANE)

    # Batch tiling: big row tiles, no padding of B. Grid handles ragged tail.
    tb = min(_round_up(tile_b, SUBLANE), _round_up(B, SUBLANE))
    if B > SUBLANE and pl.cdiv(B, tb) < 2:
        # Prefer >= 2 grid steps so the "parallel" axis can use both v7x TCs.
        tb = _round_up(pl.cdiv(B, 2), SUBLANE)
    n_tiles = pl.cdiv(B, tb)

    # Tiny weight preprocessing only (bf16 cast + H zero-padding).
    w1_p = jnp.zeros((I, H_p), jnp.bfloat16).at[:, :H].set(w1.astype(jnp.bfloat16))
    b1_p = jnp.zeros((1, H_p), jnp.float32).at[:, :H].set(b1.astype(jnp.float32))
    w2_p = jnp.zeros((H_p, O), jnp.bfloat16).at[:H, :].set(w2.astype(jnp.bfloat16))
    b2_f = b2.astype(jnp.float32)

    cost = pl.CostEstimate(
        flops=2 * B * (I * H_p + H_p * O),
        transcendentals=0,
        bytes_accessed=(x.size * 4 + w1_p.size * 2 + w2_p.size * 2
                        + b1_p.size * 4 + b2_f.size * 4 + B * O * 4),
    )

    out = pl.pallas_call(
        mlp_kernel,
        out_shape=jax.ShapeDtypeStruct((B, O), jnp.float32),
        grid=(n_tiles,),
        in_specs=[
            # x streams one batch tile per grid step at its logical width I.
            pl.BlockSpec((tb, I), lambda i: (i, 0)),
            # Weights / biases: constant block index -> DMA'd once, VMEM-resident.
            pl.BlockSpec((I, H_p), lambda i: (0, 0)),
            pl.BlockSpec((1, H_p), lambda i: (0, 0)),
            pl.BlockSpec((H_p, O), lambda i: (0, 0)),
            pl.BlockSpec((1, O), lambda i: (0, 0)),
        ],
        # Output written at its logical shape: no padding slab, no post-slice.
        out_specs=pl.BlockSpec((tb, O), lambda i: (i, 0)),
        compiler_params=pltpu.CompilerParams(
            dimension_semantics=("parallel",),
        ),
        cost_estimate=cost,
    )(x, w1_p, b1_p, w2_p, b2_f)

    return out


def init_params(key, input_size, hidden_size, output_size):
    """Deterministic init mimicking nn.Linear default (uniform +-1/sqrt(fan_in))."""
    k1, k2, k3, k4 = jax.random.split(key, 4)
    bound1 = 1.0 / (input_size ** 0.5)
    bound2 = 1.0 / (hidden_size ** 0.5)
    w1 = jax.random.uniform(k1, (input_size, hidden_size), jnp.float32, -bound1, bound1)
    b1 = jax.random.uniform(k2, (1, hidden_size), jnp.float32, -bound1, bound1)
    w2 = jax.random.uniform(k3, (hidden_size, output_size), jnp.float32, -bound2, bound2)
    b2 = jax.random.uniform(k4, (1, output_size), jnp.float32, -bound2, bound2)
    return w1, b1, w2, b2


if __name__ == "__main__":
    batch = 8
    input_size = 32
    hidden_size = 64
    output_size = 16

    key = jax.random.PRNGKey(0)
    kx, kp = jax.random.split(key)
    x = jax.random.normal(kx, (batch, input_size), jnp.float32)
    w1, b1, w2, b2 = init_params(kp, input_size, hidden_size, output_size)

    out = flashcard_rl_forward(x, w1, b1, w2, b2)
    out = jax.block_until_ready(out)
    assert out.shape == (batch, output_size)
    assert bool(jnp.all(jnp.isfinite(out)))

    # Reference with the same bf16-matmul / f32-accumulate recipe as the kernel.
    xb, w1b, w2b = (x.astype(jnp.bfloat16), w1.astype(jnp.bfloat16),
                    w2.astype(jnp.bfloat16))
    h_ref = jnp.maximum(
        jnp.dot(xb, w1b, preferred_element_type=jnp.float32) + b1, 0.0)
    ref_bf16 = jnp.dot(h_ref.astype(jnp.bfloat16), w2b,
                       preferred_element_type=jnp.float32) + b2
    assert jnp.allclose(out, ref_bf16, atol=2e-2, rtol=2e-2)

    # Loose sanity check against the pure-f32 PyTorch-equivalent forward.
    ref_f32 = jnp.maximum(x @ w1 + b1, 0.0) @ w2 + b2
    assert jnp.allclose(out, ref_f32, atol=5e-2, rtol=5e-2)

    print("KERNEL_OK")
</pallas_src>

<mosaic_0001>
module attributes {stable_mosaic.version = 11 : i64} {
  func.func @mlp_kernel(%arg0: i32, %arg1: memref<8x32xf32, #tpu.memory_space<vmem>>, %arg2: memref<32x128xbf16, #tpu.memory_space<vmem>>, %arg3: memref<1x128xf32, #tpu.memory_space<vmem>>, %arg4: memref<128x16xbf16, #tpu.memory_space<vmem>>, %arg5: memref<1x16xf32, #tpu.memory_space<vmem>>, %arg6: memref<8x16xf32, #tpu.memory_space<vmem>>) attributes {dimension_semantics = [#tpu.dimension_semantics<parallel>], iteration_bounds = array<i64: 1>, scalar_prefetch = 0 : i64, scratch_operands = 0 : i64, tpu.core_type = #tpu.core_type<tc>, window_params = [{transform_indices = @transform_0, window_bounds = array<i64: 8, 32>}, {pipeline_mode = #tpu.pipeline_mode<synchronous>, transform_indices = @transform_1, window_bounds = array<i64: 32, 128>}, {pipeline_mode = #tpu.pipeline_mode<synchronous>, transform_indices = @transform_2, window_bounds = array<i64: 1, 128>}, {pipeline_mode = #tpu.pipeline_mode<synchronous>, transform_indices = @transform_3, window_bounds = array<i64: 128, 16>}, {pipeline_mode = #tpu.pipeline_mode<synchronous>, transform_indices = @transform_4, window_bounds = array<i64: 1, 16>}, {transform_indices = @transform_5, window_bounds = array<i64: 8, 16>}]} {
    %c0 = arith.constant 0 : index
    %c0_0 = arith.constant 0 : index
    %0 = vector.load %arg1[%c0, %c0_0] : memref<8x32xf32, #tpu.memory_space<vmem>>, vector<8x32xf32>
    %1 = arith.truncf %0 : vector<8x32xf32> to vector<8x32xbf16>
    %c0_1 = arith.constant 0 : index
    %c0_2 = arith.constant 0 : index
    %2 = vector.load %arg2[%c0_1, %c0_2] : memref<32x128xbf16, #tpu.memory_space<vmem>>, vector<32x128xbf16>
    %cst = arith.constant dense<0.000000e+00> : vector<8x128xf32>
    %3 = tpu.matmul %1, %2, %cst {dimension_numbers = #tpu.dot_dimension_numbers<[1], [0], [0], [1], [0, 0, 1, 1], [], []>} : vector<8x32xbf16>, vector<32x128xbf16>, vector<8x128xf32> -> vector<8x128xf32>
    %c0_3 = arith.constant 0 : index
    %c0_4 = arith.constant 0 : index
    %4 = vector.load %arg3[%c0_3, %c0_4] : memref<1x128xf32, #tpu.memory_space<vmem>>, vector<1x128xf32>
    %5 = vector.broadcast %4 : vector<1x128xf32> to vector<8x128xf32>
    %6 = arith.addf %3, %5 : vector<8x128xf32>
    %cst_5 = arith.constant 0.000000e+00 : f32
    %7 = vector.broadcast %cst_5 : f32 to vector<8x128xf32>
    %8 = arith.maximumf %6, %7 : vector<8x128xf32>
    %9 = arith.truncf %8 : vector<8x128xf32> to vector<8x128xbf16>
    %c0_6 = arith.constant 0 : index
    %c0_7 = arith.constant 0 : index
    %10 = vector.load %arg4[%c0_6, %c0_7] : memref<128x16xbf16, #tpu.memory_space<vmem>>, vector<128x16xbf16>
    %cst_8 = arith.constant dense<0.000000e+00> : vector<8x16xf32>
    %11 = tpu.matmul %9, %10, %cst_8 {dimension_numbers = #tpu.dot_dimension_numbers<[1], [0], [0], [1], [0, 0, 1, 1], [], []>} : vector<8x128xbf16>, vector<128x16xbf16>, vector<8x16xf32> -> vector<8x16xf32>
    %c0_9 = arith.constant 0 : index
    %c0_10 = arith.constant 0 : index
    %12 = vector.load %arg5[%c0_9, %c0_10] : memref<1x16xf32, #tpu.memory_space<vmem>>, vector<1x16xf32>
    %13 = vector.broadcast %12 : vector<1x16xf32> to vector<8x16xf32>
    %14 = arith.addf %11, %13 : vector<8x16xf32>
    %c0_11 = arith.constant 0 : index
    %c0_12 = arith.constant 0 : index
    %15 = vector.load %arg6[%c0_11, %c0_12] : memref<8x16xf32, #tpu.memory_space<vmem>>, vector<8x16xf32>
    tpu.vector_store %arg6[%c0_11, %c0_12], %14 {strides = array<i32>} : memref<8x16xf32, #tpu.memory_space<vmem>>, vector<8x16xf32>,
    return
  }
  func.func @transform_0(%arg0: i32) -> (i32, i32) {
    %c0_i32 = arith.constant 0 : i32
    %c0_i32_0 = arith.constant 0 : i32
    return %arg0, %c0_i32 : i32, i32
  }
  func.func @transform_1(%arg0: i32) -> (i32, i32) {
    %c0_i32 = arith.constant 0 : i32
    %c0_i32_0 = arith.constant 0 : i32
    %c0_i32_1 = arith.constant 0 : i32
    return %c0_i32, %c0_i32_0 : i32, i32
  }
  func.func @transform_2(%arg0: i32) -> (i32, i32) {
    %c0_i32 = arith.constant 0 : i32
    %c0_i32_0 = arith.constant 0 : i32
    %c0_i32_1 = arith.constant 0 : i32
    return %c0_i32, %c0_i32_0 : i32, i32
  }
  func.func @transform_3(%arg0: i32) -> (i32, i32) {
    %c0_i32 = arith.constant 0 : i32
    %c0_i32_0 = arith.constant 0 : i32
    %c0_i32_1 = arith.constant 0 : i32
    return %c0_i32, %c0_i32_0 : i32, i32
  }
  func.func @transform_4(%arg0: i32) -> (i32, i32) {
    %c0_i32 = arith.constant 0 : i32
    %c0_i32_0 = arith.constant 0 : i32
    %c0_i32_1 = arith.constant 0 : i32
    return %c0_i32, %c0_i32_0 : i32, i32
  }
  func.func @transform_5(%arg0: i32) -> (i32, i32) {
    %c0_i32 = arith.constant 0 : i32
    %c0_i32_0 = arith.constant 0 : i32
    return %arg0, %c0_i32 : i32, i32
  }
}

</mosaic_0001>

<llo_original>
// kernel: tpu_custom_call.1
$region0: #{tpu_custom_call.1}
  #allocation0 [shape = 'u32[]', space=smem, size = 0x4, offset = 0x4, fixed_abs, tag = 'smem constant byte address 0x4 - core index']
  #allocation1 [shape = 'u32[72,128]{1,0:T(1,128)}', space=vmem, size = 0x9000, scoped, tag = 'internal scratch']
  %s0 = inlined_call_operand.vmem [shape: f32[8,32], index: 0, kind: input, shape index: {}]
  %s1 = inlined_call_operand.vmem [shape: bf16[32,128], index: 1, kind: input, shape index: {}]
  %s2 = inlined_call_operand.vmem [shape: f32[1,128], index: 2, kind: input, shape index: {}]
  %s3 = inlined_call_operand.vmem [shape: bf16[128,16], index: 3, kind: input, shape index: {}]
  %s4 = inlined_call_operand.vmem [shape: f32[1,16], index: 4, kind: input, shape index: {}]
  %s5 = inlined_call_operand.hbm [shape: f32[8,16], index: 5, kind: output, shape index: {}]
  %s6 = sld [smem:[#allocation0]]
  $region30: #{tpu_custom_call.1} parent=0
    _
  %s8 = ssub.s32 1, %s6
  %s9 = scalar_select 0, %s8, %s6
  $region1: #{tpu_custom_call.1} parent=0
    #allocation2 [shape = 'u8[4096]{0}', space=vmem, size = 0x1000, scoped, tag = 'output window, operand 0, single buffered']
    #allocation3 [shape = 's32[1]{0}', space=sflag, size = 0x4, scoped, tag = 'scoped memory for tpu_custom_call.1']
    %10 = vsyncpa [#allocation3], 0
    // Predicated region
    $region2: #{tpu_custom_call.1} parent=1 // pred_check
      _
    $region3: #{tpu_custom_call.1} parent=1 // pred_check_branch
      %12 = sbr.rel (0) target = $region5
    $region4: #{tpu_custom_call.1} parent=1 // pred_region
      _
    $region5: #{tpu_custom_call.1} parent=1 // pred_fallthru
      _
    // Predicated region
    $region6: #{tpu_custom_call.1} parent=1 // pred_check
      _
    $region7: #{tpu_custom_call.1} parent=1 // pred_check_branch
      %14 = sbr.rel (0) target = $region9
    $region8: #{tpu_custom_call.1} parent=1 // pred_region
      _
    $region9: #{tpu_custom_call.1} parent=1 // pred_fallthru
      _
    // Predicated region
    $region10: #{tpu_custom_call.1} parent=1 // pred_check
      _
    $region11: #{tpu_custom_call.1} parent=1 // pred_check_branch
      %16 = sbr.rel (0) target = $region13
    $region12: #{tpu_custom_call.1} parent=1 // pred_region
      _
    $region13: #{tpu_custom_call.1} parent=1 // pred_fallthru
      _
    // Predicated region
    $region14: #{tpu_custom_call.1} parent=1 // pred_check
      _
    $region15: #{tpu_custom_call.1} parent=1 // pred_check_branch
      %18 = sbr.rel (0) target = $region17
    $region16: #{tpu_custom_call.1} parent=1 // pred_region
      _
    $region17: #{tpu_custom_call.1} parent=1 // pred_fallthru
      _
    // Predicated region
    $region18: #{tpu_custom_call.1} parent=1 // pred_check
      _
    $region19: #{tpu_custom_call.1} parent=1 // pred_check_branch
      %20 = sbr.rel (0) target = $region21
    $region20: #{tpu_custom_call.1} parent=1 // pred_region
      _
    $region21: #{tpu_custom_call.1} parent=1 // pred_fallthru
      _
    %v22 = vld [vmem:[%s0] sm:$0xff]
    %v23 = vpack.c.bf16 %v22, %v22
    %v24 = vld [vmem:[%s1] sm:$0xf]
    %v25 = vld [vmem:[%s1 + $0x4] sm:$0xf]
    %v26 = vld [vmem:[%s1 + $0x8] sm:$0xf]
    %v27 = vld [vmem:[%s1 + $0xc] sm:$0xf]
    %v28 = vld [vmem:[%s2] sm:$0x1]
    %v30 = vperm.slane %v28, 0
    %v36 = vunpack.c.l.b16 %v24
    %v37 = vunpack.c.l.b16 %v25
    %v38 = vunpack.c.l.b16 %v26
    %v39 = vunpack.c.l.b16 %v27
    %v40 = vpack.c.b16 %v37, %v36
    %v41 = vpack.c.b16 %v39, %v38
    %vm44 = vcmask 261120
    %v46 = vsel %vm44, %v23, 0
    %48 = vmatpush.bf16.msra.mxu0 0
    %49 = vmatpush.bf16.msra.mxu0 0
    %50 = vmatpush.bf16.msra.mxu0 0
    %51 = vmatpush.bf16.msra.mxu0 0
    %52 = vmatpush.bf16.msra.mxu0 0
    %53 = vmatpush.bf16.msra.mxu0 0
    %54 = vmatpush.bf16.msra.mxu0 %v41
    %55 = vmatpush.bf16.msra.mxu0 %v40
    %56 = vmatmul.bf16.gmra.mxu0 %v46
    %v57 = vpop.f32.mrf.mxu0
    %v58 = vadd.f32 %v30, %v57
    %v59 = vpop.f32.mrf.mxu0
    %60 = vdwg.mxu0
    %v61 = vmax.f32 %v58, 0.0
    %v62 = vpack.c.bf16 %v61, %v61
    %v63 = vld [vmem:[%s3] sm:$0xf]
    %v64 = vld [vmem:[%s3 + $0x4] sm:$0xf]
    %v65 = vld [vmem:[%s3 + $0x8] sm:$0xf]
    %v66 = vld [vmem:[%s3 + $0xc] sm:$0xf]
    %v67 = vld [vmem:[%s3 + $0x10] sm:$0xf]
    %v68 = vld [vmem:[%s3 + $0x14] sm:$0xf]
    %v69 = vld [vmem:[%s3 + $0x18] sm:$0xf]
    %v70 = vld [vmem:[%s3 + $0x1c] sm:$0xf]
    %v71 = vld [vmem:[%s3 + $0x20] sm:$0xf]
    %v72 = vld [vmem:[%s3 + $0x24] sm:$0xf]
    %v73 = vld [vmem:[%s3 + $0x28] sm:$0xf]
    %v74 = vld [vmem:[%s3 + $0x2c] sm:$0xf]
    %v75 = vld [vmem:[%s3 + $0x30] sm:$0xf]
    %v76 = vld [vmem:[%s3 + $0x34] sm:$0xf]
    %v77 = vld [vmem:[%s3 + $0x38] sm:$0xf]
    %v78 = vld [vmem:[%s3 + $0x3c] sm:$0xf]
    %v79 = vld [vmem:[%s4] sm:$0x1]
    %v81 = vperm.slane %v79, 0
    %v99 = vunpack.c.l.b16 %v63
    %v100 = vunpack.c.l.b16 %v64
    %v101 = vunpack.c.l.b16 %v65
    %v102 = vunpack.c.l.b16 %v66
    %v103 = vunpack.c.l.b16 %v67
    %v104 = vunpack.c.l.b16 %v68
    %v105 = vunpack.c.l.b16 %v69
    %v106 = vunpack.c.l.b16 %v70
    %v107 = vunpack.c.l.b16 %v71
    %v108 = vunpack.c.l.b16 %v72
    %v109 = vunpack.c.l.b16 %v73
    %v110 = vunpack.c.l.b16 %v74
    %v111 = vunpack.c.l.b16 %v75
    %v112 = vunpack.c.l.b16 %v76
    %v113 = vunpack.c.l.b16 %v77
    %v114 = vunpack.c.l.b16 %v78
    %v115 = vpack.c.b16 %v100, %v99
    %v116 = vpack.c.b16 %v102, %v101
    %v117 = vpack.c.b16 %v104, %v103
    %v118 = vpack.c.b16 %v106, %v105
    %v119 = vpack.c.b16 %v108, %v107
    %v120 = vpack.c.b16 %v110, %v109
    %v121 = vpack.c.b16 %v112, %v111
    %v122 = vpack.c.b16 %v114, %v113
    %131 = vmatpush.bf16.msra.mxu0 %v122
    %132 = vmatpush.bf16.msra.mxu0 %v121
    %133 = vmatpush.bf16.msra.mxu0 %v120
    %134 = vmatpush.bf16.msra.mxu0 %v119
    %135 = vmatpush.bf16.msra.mxu0 %v118
    %136 = vmatpush.bf16.msra.mxu0 %v117
    %137 = vmatpush.bf16.msra.mxu0 %v116
    %138 = vmatpush.bf16.msra.mxu0 %v115
    %139 = vmatmul.bf16.gmra.mxu0 %v62
    %v140 = vpop.f32.mrf.mxu0
    %v141 = vadd.f32 %v81, %v140
    %v142 = vpop.f32.mrf.mxu0
    %143 = vdwg.mxu0
    %vm144 = vcmask 130048
    %145 = vst.msk [vmem:[#allocation2] sm:$0xff] %vm144, %v141
    // Predicated region
    $region22: #{tpu_custom_call.1} parent=1 // pred_check
      _
    $region23: #{tpu_custom_call.1} parent=1 // pred_check_branch
      %147 = sbr.rel (0) target = $region25
    $region24: #{tpu_custom_call.1} parent=1 // pred_region
      %149 = vsyncadd [#allocation3], 0
      %s151 = sshll.u32 [#allocation2], 4
      %s152 = int_to_ptr.vmem [resolvable:$true] %s151
      %s153 = sshll.u32 %s5, 4
      %s154 = int_to_ptr.hbm [resolvable:$true] %s153
      %156 = dma.vmem_to_hbm [thread:$0]  %s152, 128, %s154, [#allocation3]
    $region25: #{tpu_custom_call.1} parent=1 // pred_fallthru
      _
    // Predicated region
    $region26: #{tpu_custom_call.1} parent=1 // pred_check
      _
    $region27: #{tpu_custom_call.1} parent=1 // pred_check_branch
      %158 = sbr.rel (0) target = $region29
    $region28: #{tpu_custom_call.1} parent=1 // pred_region
      %160 = dma.done [#allocation3], 128
    $region29: #{tpu_custom_call.1} parent=1 // pred_fallthru
      _
    %161 = vsyncpa [#allocation3], 1

</llo_original>
